<compile_context>
chip_gen: v7x
topology: tpu7x:2x2x1
jax: 0.10.0
libtpu: 0.0.40
codegen_flags: <defaults>
</compile_context>

<pallas_src>
import jax
import jax.numpy as jnp
from jax import lax
from jax.experimental import pallas as pl
from jax.experimental.pallas import tpu as pltpu

_LANE = 128
_SUBLANE = 8
_VMEM_LIMIT = 48 * 1024 * 1024   # above 16/32 MiB default scoped, below v7x physical


def _round_up(n, m):
    return ((n + m - 1) // m) * m


def _pick_row_tile(n):
    for cand in (512, 256, 128, 64, 32, 16, 8):
        if n % cand == 0:
            return cand
    return n


# ----------------------------------------------------------------------------
# zero-padding helpers (zero padding preserves the math exactly)
# ----------------------------------------------------------------------------
def _pad_cols(w, new_c):
    r, c = w.shape
    if new_c == c:
        return w
    return jnp.concatenate([w, jnp.zeros((r, new_c - c), w.dtype)], axis=1)


def _pad_rows(w, new_r):
    r, c = w.shape
    if new_r == r:
        return w
    return jnp.concatenate([jnp.asarray(w), jnp.zeros((new_r - r, c), w.dtype)], axis=0)


def _pad_gates(w, h, hp):
    """(rows, 4*h) -> (rows, 4*hp), keeping the i,f,g,o gate blocks separated."""
    if hp == h:
        return w
    blocks = [_pad_cols(w[:, g * h:(g + 1) * h], hp) for g in range(4)]
    return jnp.concatenate(blocks, axis=1)


def _pad2(a, nr, nc):
    return jnp.zeros((nr, nc), a.dtype).at[:a.shape[0], :a.shape[1]].set(a)


# ----------------------------------------------------------------------------
# Kernel 1: fused encoder1 -> PReLU -> encoder2 -> (hoisted) @W_ih + b_lstm
# ----------------------------------------------------------------------------
def _encoder_gates_kernel(x_ref, w1_ref, b1_ref, w2_ref, b2_ref,
                          wih_ref, bl_ref, alpha_ref, o_ref):
    a = alpha_ref[0, 0]
    x = x_ref[...].astype(jnp.bfloat16)
    h1 = jnp.dot(x, w1_ref[...], preferred_element_type=jnp.float32) + b1_ref[...]
    h1 = jnp.where(h1 > 0, h1, a * h1)                                   # PReLU (f32)
    xe = jnp.dot(h1.astype(jnp.bfloat16), w2_ref[...],
                 preferred_element_type=jnp.float32) + b2_ref[...]
    o_ref[...] = (jnp.dot(xe.astype(jnp.bfloat16), wih_ref[...],
                          preferred_element_type=jnp.float32)
                  + bl_ref[...]).astype(o_ref.dtype)


def _encoder_gates(x_rows, w1, b1, w2, b2, wih, bl, alpha):
    n, d = x_rows.shape
    g = wih.shape[1]
    tile = _pick_row_tile(n)
    full = lambda arr: pl.BlockSpec(arr.shape, lambda i: (0,) * arr.ndim)
    return pl.pallas_call(
        _encoder_gates_kernel,
        out_shape=jax.ShapeDtypeStruct((n, g), jnp.float32),
        grid=(n // tile,),
        in_specs=[pl.BlockSpec((tile, d), lambda i: (i, 0)),
                  full(w1), full(b1), full(w2), full(b2), full(wih), full(bl),
                  pl.BlockSpec(memory_space=pltpu.MemorySpace.SMEM)],
        out_specs=pl.BlockSpec((tile, g), lambda i: (i, 0)),
        compiler_params=pltpu.CompilerParams(
            dimension_semantics=("parallel",),
            vmem_limit_bytes=_VMEM_LIMIT),
    )(x_rows, w1, b1, w2, b2, wih, bl, alpha)


# ----------------------------------------------------------------------------
# Kernel 2: masked LSTM recurrence (time-chunked grid, state in VMEM scratch)
# ----------------------------------------------------------------------------
def _make_lstm_kernel(tblk, hp):
    def kernel(gx_ref, len_ref, h0_ref, c0_ref, whh_ref, out_ref, h_sc, c_sc):
        j = pl.program_id(0)

        @pl.when(j == 0)
        def _():
            h_sc[...] = h0_ref[...]
            c_sc[...] = c0_ref[...]

        lengths = len_ref[...]                    # (Bp, 1) int32
        w_hh = whh_ref[...]                       # (Hp, 4Hp) bf16, loaded once per chunk
        base_t = j * tblk
        for tt in range(tblk):                    # static unroll: LLO sees whole body
            h = h_sc[...]
            c = c_sc[...]
            gates = gx_ref[tt] + jnp.dot(h.astype(jnp.bfloat16), w_hh,
                                         preferred_element_type=jnp.float32)
            i_g = jax.nn.sigmoid(gates[:, 0 * hp:1 * hp])     # 128-lane aligned slices
            f_g = jax.nn.sigmoid(gates[:, 1 * hp:2 * hp])
            g_g = jnp.tanh(gates[:, 2 * hp:3 * hp])
            o_g = jax.nn.sigmoid(gates[:, 3 * hp:4 * hp])
            c_new = f_g * c + i_g * g_g
            h_new = o_g * jnp.tanh(c_new)
            valid = (base_t + tt) < lengths       # packed-sequence mask, (Bp, 1)
            h_sc[...] = jnp.where(valid, h_new, h)
            c_sc[...] = jnp.where(valid, c_new, c)
            out_ref[tt] = jnp.where(valid, h_new, 0.0)
    return kernel


def _lstm(gates_tm, lens, h0, c0, whh, tblk):
    tp, bp, g = gates_tm.shape
    hp = g // 4
    full = lambda arr: pl.BlockSpec(arr.shape, lambda j: (0,) * arr.ndim)
    return pl.pallas_call(
        _make_lstm_kernel(tblk, hp),
        out_shape=jax.ShapeDtypeStruct((tp, bp, hp), jnp.float32),
        grid=(tp // tblk,),
        in_specs=[pl.BlockSpec((tblk, bp, g), lambda j: (j, 0, 0)),
                  full(lens), full(h0), full(c0), full(whh)],
        out_specs=pl.BlockSpec((tblk, bp, hp), lambda j: (j, 0, 0)),
        scratch_shapes=[pltpu.VMEM((bp, hp), jnp.float32),
                        pltpu.VMEM((bp, hp), jnp.float32)],
        compiler_params=pltpu.CompilerParams(
            dimension_semantics=("arbitrary",),
            vmem_limit_bytes=_VMEM_LIMIT),
    )(gates_tm, lens, h0, c0, whh)


# ----------------------------------------------------------------------------
# Kernel 3: fused decoder2 -> PReLU -> decoder1 (lane-dense padded output)
# ----------------------------------------------------------------------------
def _decoder_kernel(h_ref, w2_ref, b2_ref, w1_ref, b1_ref, alpha_ref, o_ref):
    a = alpha_ref[0, 0]
    h = h_ref[...].astype(jnp.bfloat16)
    d = jnp.dot(h, w2_ref[...], preferred_element_type=jnp.float32) + b2_ref[...]
    d = jnp.where(d > 0, d, a * d)                                       # PReLU (f32)
    o_ref[...] = (jnp.dot(d.astype(jnp.bfloat16), w1_ref[...],
                          preferred_element_type=jnp.float32)
                  + b1_ref[...]).astype(o_ref.dtype)


def _decoder(h_rows, w2, b2, w1, b1, alpha):
    n, hp = h_rows.shape
    dp = w1.shape[1]
    tile = _pick_row_tile(n)
    full = lambda arr: pl.BlockSpec(arr.shape, lambda i: (0,) * arr.ndim)
    return pl.pallas_call(
        _decoder_kernel,
        out_shape=jax.ShapeDtypeStruct((n, dp), jnp.float32),
        grid=(n // tile,),
        in_specs=[pl.BlockSpec((tile, hp), lambda i: (i, 0)),
                  full(w2), full(b2), full(w1), full(b1),
                  pl.BlockSpec(memory_space=pltpu.MemorySpace.SMEM)],
        out_specs=pl.BlockSpec((tile, dp), lambda i: (i, 0)),
        compiler_params=pltpu.CompilerParams(
            dimension_semantics=("parallel",),
            vmem_limit_bytes=_VMEM_LIMIT),
    )(h_rows, w2, b2, w1, b1, alpha)


# ----------------------------------------------------------------------------
# Full forward pass
# ----------------------------------------------------------------------------
def lstm_model_forward(params, x, x_lengths):
    B, T, D = x.shape
    H = params["w_hh_t"].shape[0]
    Bp = _round_up(B, _SUBLANE)
    Hp = _round_up(H, _LANE)
    Dp = _round_up(D, _LANE)
    Tblk = 8
    Tp = _round_up(T, Tblk)
    f32, bf16 = jnp.float32, jnp.bfloat16

    # pad (with zeros) + pre-cast MXU operands to bf16; biases stay f32
    w1 = params["w_enc1"].astype(bf16)
    b1 = params["b_enc1"]
    w2 = _pad_cols(params["w_enc2"], Hp).astype(bf16)
    b2 = _pad_cols(params["b_enc2"], Hp)
    wih = _pad_rows(_pad_gates(params["w_ih_t"], H, Hp), Hp).astype(bf16)
    whh = _pad_rows(_pad_gates(params["w_hh_t"], H, Hp), Hp).astype(bf16)
    bl = _pad_gates(params["b_lstm"], H, Hp)
    wd2 = _pad_rows(params["w_dec2"], Hp).astype(bf16)
    bd2 = params["b_dec2"]
    wd1 = _pad_cols(params["w_dec1"], Dp).astype(bf16)
    bd1 = _pad_cols(params["b_dec1"], Dp)
    alpha = params["alpha"]
    h0 = _pad2(params["h0"], Bp, Hp)
    c0 = _pad2(params["c0"], Bp, Hp)

    # time-major, tile-aligned activations (only host layout passes are on the
    # smallest tensors: the raw input here, and the final sliced output below)
    x_tm = jnp.zeros((Tp, Bp, D), f32).at[:T, :B, :].set(jnp.swapaxes(x, 0, 1))
    lens = jnp.zeros((Bp, 1), jnp.int32).at[:B, 0].set(
        jnp.asarray(x_lengths, jnp.int32))

    # encoder1 -> PReLU -> encoder2 -> hoisted x@W_ih + b (one fused kernel)
    gates_rows = _encoder_gates(x_tm.reshape(Tp * Bp, D),
                                w1, b1, w2, b2, wih, bl, alpha)   # (Tp*Bp, 4Hp)
    gates_tm = gates_rows.reshape(Tp, Bp, 4 * Hp)

    # pack_padded_sequence + LSTM + pad_packed_sequence == masked recurrence
    h_tm = _lstm(gates_tm, lens, h0, c0, whh, Tblk)               # (Tp, Bp, Hp)

    # decoder2 -> PReLU -> decoder1 (applied to zero-padded rows too, as torch does)
    y_rows = _decoder(h_tm.reshape(Tp * Bp, Hp), wd2, bd2, wd1, bd1, alpha)
    y_tm = y_rows.reshape(Tp, Bp, Dp)

    t_max = int(max(x_lengths))      # pad_packed_sequence pads to the max length
    return jnp.swapaxes(y_tm[:t_max, :B, :D], 0, 1)               # (B, t_max, D)


# ----------------------------------------------------------------------------
# Deterministic parameters + pure-JAX reference
# ----------------------------------------------------------------------------
def make_params(key, input_dim, hidden_dim, batch_size):
    ks = jax.random.split(key, 12)
    s = 0.1
    f32 = jnp.float32
    return {
        # weights stored pre-transposed: (in, out)
        "w_enc1": s * jax.random.normal(ks[0], (input_dim, 256), f32),
        "b_enc1": s * jax.random.normal(ks[1], (1, 256), f32),
        "w_enc2": s * jax.random.normal(ks[2], (256, hidden_dim), f32),
        "b_enc2": s * jax.random.normal(ks[3], (1, hidden_dim), f32),
        "alpha": jnp.full((1, 1), 0.25, f32),            # nn.PReLU() default init
        "w_ih_t": s * jax.random.normal(ks[4], (hidden_dim, 4 * hidden_dim), f32),
        "w_hh_t": s * jax.random.normal(ks[5], (hidden_dim, 4 * hidden_dim), f32),
        "b_lstm": s * jax.random.normal(ks[6], (1, 4 * hidden_dim), f32),  # b_ih+b_hh
        "w_dec2": s * jax.random.normal(ks[7], (hidden_dim, 256), f32),
        "b_dec2": s * jax.random.normal(ks[8], (1, 256), f32),
        "w_dec1": s * jax.random.normal(ks[9], (256, input_dim), f32),
        "b_dec1": s * jax.random.normal(ks[10], (1, input_dim), f32),
        # TODO(synk): the module draws h0/c0 with torch.randn every forward; here
        # they are generated deterministically from the param key instead.
        "h0": jax.random.normal(ks[11], (batch_size, hidden_dim), f32),
        "c0": jax.random.normal(jax.random.fold_in(ks[11], 1),
                                (batch_size, hidden_dim), f32),
    }


def reference_forward(params, x, x_lengths, match_kernel_precision=False):
    """Pure-JAX reference. match_kernel_precision=True mirrors the kernel's
    bf16 matmul operands (f32 accumulation) for a tight numerical check."""
    B, T, D = x.shape
    H = params["w_hh_t"].shape[0]
    a = params["alpha"][0, 0]

    if match_kernel_precision:
        def mm(p, q):
            return jnp.dot(p.astype(jnp.bfloat16), q.astype(jnp.bfloat16),
                           preferred_element_type=jnp.float32)
    else:
        def mm(p, q):
            return jnp.dot(p, q, preferred_element_type=jnp.float32)

    def prelu(v):
        return jnp.where(v > 0, v, a * v)

    h1 = prelu(mm(x.reshape(B * T, D), params["w_enc1"]) + params["b_enc1"])
    xe = (mm(h1, params["w_enc2"]) + params["b_enc2"]).reshape(B, T, H)

    lengths = jnp.asarray(x_lengths, jnp.int32)

    def step(carry, t):
        h, c = carry
        gates = (mm(xe[:, t, :], params["w_ih_t"]) + mm(h, params["w_hh_t"])
                 + params["b_lstm"])
        i_g = jax.nn.sigmoid(gates[:, 0 * H:1 * H])
        f_g = jax.nn.sigmoid(gates[:, 1 * H:2 * H])
        g_g = jnp.tanh(gates[:, 2 * H:3 * H])
        o_g = jax.nn.sigmoid(gates[:, 3 * H:4 * H])
        c_new = f_g * c + i_g * g_g
        h_new = o_g * jnp.tanh(c_new)
        valid = (t < lengths)[:, None]
        h = jnp.where(valid, h_new, h)
        c = jnp.where(valid, c_new, c)
        return (h, c), jnp.where(valid, h_new, 0.0)

    (_, _), outs = lax.scan(step, (params["h0"], params["c0"]), jnp.arange(T))
    t_max = int(max(x_lengths))
    out = outs.transpose(1, 0, 2)[:, :t_max, :]
    d = prelu(mm(out.reshape(-1, H), params["w_dec2"]) + params["b_dec2"])
    y = mm(d, params["w_dec1"]) + params["b_dec1"]
    return y.reshape(B, t_max, D)


if __name__ == "__main__":
    B, T, D, H = 4, 8, 32, 32
    key = jax.random.PRNGKey(0)
    kx, kp = jax.random.split(key)

    x = jax.random.normal(kx, (B, T, D), jnp.float32)
    x_lengths = [8, 6, 4, 2]          # sorted descending (pack_padded default)
    params = make_params(kp, D, H, B)

    out = jax.block_until_ready(lstm_model_forward(params, x, x_lengths))
    assert out.shape == (B, max(x_lengths), D), out.shape

    # tight check vs a reference that mirrors the kernel's bf16 MXU operands
    ref_bf16 = jax.block_until_ready(
        reference_forward(params, x, x_lengths, match_kernel_precision=True))
    err_tight = float(jnp.max(jnp.abs(out - ref_bf16)))
    assert jnp.allclose(out, ref_bf16, atol=2e-3, rtol=2e-3), err_tight

    # loose check vs the full-f32 reference (bf16 operand rounding is the only diff)
    ref_f32 = jax.block_until_ready(
        reference_forward(params, x, x_lengths, match_kernel_precision=False))
    err_loose = float(jnp.max(jnp.abs(out - ref_f32)))
    assert jnp.allclose(out, ref_f32, atol=5e-2, rtol=5e-2), err_loose

    print("KERNEL_OK")
</pallas_src>

<mosaic_0001>
module attributes {stable_mosaic.version = 11 : i64} {
  func.func @_encoder_gates_kernel(%arg0: i32, %arg1: memref<64x32xf32, #tpu.memory_space<vmem>>, %arg2: memref<32x256xbf16, #tpu.memory_space<vmem>>, %arg3: memref<1x256xf32, #tpu.memory_space<vmem>>, %arg4: memref<256x128xbf16, #tpu.memory_space<vmem>>, %arg5: memref<1x128xf32, #tpu.memory_space<vmem>>, %arg6: memref<128x512xbf16, #tpu.memory_space<vmem>>, %arg7: memref<1x512xf32, #tpu.memory_space<vmem>>, %arg8: memref<1x1xf32, #tpu.memory_space<smem>>, %arg9: memref<64x512xf32, #tpu.memory_space<vmem>>) attributes {dimension_semantics = [#tpu.dimension_semantics<parallel>], iteration_bounds = array<i64: 1>, scalar_prefetch = 0 : i64, scratch_operands = 0 : i64, tpu.core_type = #tpu.core_type<tc>, window_params = [{transform_indices = @transform_0, window_bounds = array<i64: 64, 32>}, {pipeline_mode = #tpu.pipeline_mode<synchronous>, transform_indices = @transform_1, window_bounds = array<i64: 32, 256>}, {pipeline_mode = #tpu.pipeline_mode<synchronous>, transform_indices = @transform_2, window_bounds = array<i64: 1, 256>}, {pipeline_mode = #tpu.pipeline_mode<synchronous>, transform_indices = @transform_3, window_bounds = array<i64: 256, 128>}, {pipeline_mode = #tpu.pipeline_mode<synchronous>, transform_indices = @transform_4, window_bounds = array<i64: 1, 128>}, {pipeline_mode = #tpu.pipeline_mode<synchronous>, transform_indices = @transform_5, window_bounds = array<i64: 128, 512>}, {pipeline_mode = #tpu.pipeline_mode<synchronous>, transform_indices = @transform_6, window_bounds = array<i64: 1, 512>}, {transform_indices = @transform_7, window_bounds = array<i64: 1, 1>}, {transform_indices = @transform_8, window_bounds = array<i64: 64, 512>}]} {
    %c0 = arith.constant 0 : index
    %c0_0 = arith.constant 0 : index
    %0 = memref.load %arg8[%c0, %c0_0] : memref<1x1xf32, #tpu.memory_space<smem>>
    %c0_1 = arith.constant 0 : index
    %c0_2 = arith.constant 0 : index
    %1 = vector.load %arg1[%c0_1, %c0_2] : memref<64x32xf32, #tpu.memory_space<vmem>>, vector<64x32xf32>
    %2 = arith.truncf %1 : vector<64x32xf32> to vector<64x32xbf16>
    %c0_3 = arith.constant 0 : index
    %c0_4 = arith.constant 0 : index
    %3 = vector.load %arg2[%c0_3, %c0_4] : memref<32x256xbf16, #tpu.memory_space<vmem>>, vector<32x256xbf16>
    %cst = arith.constant dense<0.000000e+00> : vector<64x256xf32>
    %4 = tpu.matmul %2, %3, %cst {dimension_numbers = #tpu.dot_dimension_numbers<[1], [0], [0], [1], [0, 0, 1, 1], [], []>} : vector<64x32xbf16>, vector<32x256xbf16>, vector<64x256xf32> -> vector<64x256xf32>
    %c0_5 = arith.constant 0 : index
    %c0_6 = arith.constant 0 : index
    %5 = vector.load %arg3[%c0_5, %c0_6] : memref<1x256xf32, #tpu.memory_space<vmem>>, vector<1x256xf32>
    %6 = vector.broadcast %5 : vector<1x256xf32> to vector<64x256xf32>
    %7 = arith.addf %4, %6 : vector<64x256xf32>
    %cst_7 = arith.constant 0.000000e+00 : f32
    %8 = vector.broadcast %cst_7 : f32 to vector<64x256xf32>
    %9 = arith.cmpf ogt, %7, %8 : vector<64x256xf32>
    %10 = vector.broadcast %0 : f32 to vector<64x256xf32>
    %11 = arith.mulf %10, %7 : vector<64x256xf32>
    %12 = arith.select %9, %7, %11 : vector<64x256xi1>, vector<64x256xf32>
    %13 = arith.truncf %12 : vector<64x256xf32> to vector<64x256xbf16>
    %c0_8 = arith.constant 0 : index
    %c0_9 = arith.constant 0 : index
    %14 = vector.load %arg4[%c0_8, %c0_9] : memref<256x128xbf16, #tpu.memory_space<vmem>>, vector<256x128xbf16>
    %cst_10 = arith.constant dense<0.000000e+00> : vector<64x128xf32>
    %15 = tpu.matmul %13, %14, %cst_10 {dimension_numbers = #tpu.dot_dimension_numbers<[1], [0], [0], [1], [0, 0, 1, 1], [], []>} : vector<64x256xbf16>, vector<256x128xbf16>, vector<64x128xf32> -> vector<64x128xf32>
    %c0_11 = arith.constant 0 : index
    %c0_12 = arith.constant 0 : index
    %16 = vector.load %arg5[%c0_11, %c0_12] : memref<1x128xf32, #tpu.memory_space<vmem>>, vector<1x128xf32>
    %17 = vector.broadcast %16 : vector<1x128xf32> to vector<64x128xf32>
    %18 = arith.addf %15, %17 : vector<64x128xf32>
    %19 = arith.truncf %18 : vector<64x128xf32> to vector<64x128xbf16>
    %c0_13 = arith.constant 0 : index
    %c0_14 = arith.constant 0 : index
    %20 = vector.load %arg6[%c0_13, %c0_14] : memref<128x512xbf16, #tpu.memory_space<vmem>>, vector<128x512xbf16>
    %cst_15 = arith.constant dense<0.000000e+00> : vector<64x512xf32>
    %21 = tpu.matmul %19, %20, %cst_15 {dimension_numbers = #tpu.dot_dimension_numbers<[1], [0], [0], [1], [0, 0, 1, 1], [], []>} : vector<64x128xbf16>, vector<128x512xbf16>, vector<64x512xf32> -> vector<64x512xf32>
    %c0_16 = arith.constant 0 : index
    %c0_17 = arith.constant 0 : index
    %22 = vector.load %arg7[%c0_16, %c0_17] : memref<1x512xf32, #tpu.memory_space<vmem>>, vector<1x512xf32>
    %23 = vector.broadcast %22 : vector<1x512xf32> to vector<64x512xf32>
    %24 = arith.addf %21, %23 : vector<64x512xf32>
    %c0_18 = arith.constant 0 : index
    %c0_19 = arith.constant 0 : index
    %25 = vector.load %arg9[%c0_18, %c0_19] : memref<64x512xf32, #tpu.memory_space<vmem>>, vector<64x512xf32>
    tpu.vector_store %arg9[%c0_18, %c0_19], %24 {strides = array<i32>} : memref<64x512xf32, #tpu.memory_space<vmem>>, vector<64x512xf32>,
    return
  }
  func.func @transform_0(%arg0: i32) -> (i32, i32) {
    %c0_i32 = arith.constant 0 : i32
    %c0_i32_0 = arith.constant 0 : i32
    return %arg0, %c0_i32 : i32, i32
  }
  func.func @transform_1(%arg0: i32) -> (i32, i32) {
    %c0_i32 = arith.constant 0 : i32
    %c0_i32_0 = arith.constant 0 : i32
    %c0_i32_1 = arith.constant 0 : i32
    return %c0_i32, %c0_i32_0 : i32, i32
  }
  func.func @transform_2(%arg0: i32) -> (i32, i32) {
    %c0_i32 = arith.constant 0 : i32
    %c0_i32_0 = arith.constant 0 : i32
    %c0_i32_1 = arith.constant 0 : i32
    return %c0_i32, %c0_i32_0 : i32, i32
  }
  func.func @transform_3(%arg0: i32) -> (i32, i32) {
    %c0_i32 = arith.constant 0 : i32
    %c0_i32_0 = arith.constant 0 : i32
    %c0_i32_1 = arith.constant 0 : i32
    return %c0_i32, %c0_i32_0 : i32, i32
  }
  func.func @transform_4(%arg0: i32) -> (i32, i32) {
    %c0_i32 = arith.constant 0 : i32
    %c0_i32_0 = arith.constant 0 : i32
    %c0_i32_1 = arith.constant 0 : i32
    return %c0_i32, %c0_i32_0 : i32, i32
  }
  func.func @transform_5(%arg0: i32) -> (i32, i32) {
    %c0_i32 = arith.constant 0 : i32
    %c0_i32_0 = arith.constant 0 : i32
    %c0_i32_1 = arith.constant 0 : i32
    return %c0_i32, %c0_i32_0 : i32, i32
  }
  func.func @transform_6(%arg0: i32) -> (i32, i32) {
    %c0_i32 = arith.constant 0 : i32
    %c0_i32_0 = arith.constant 0 : i32
    %c0_i32_1 = arith.constant 0 : i32
    return %c0_i32, %c0_i32_0 : i32, i32
  }
  func.func @transform_7(%arg0: i32) -> (i32, i32) {
    %c0_i32 = arith.constant 0 : i32
    %c0_i32_0 = arith.constant 0 : i32
    %c0_i32_1 = arith.constant 0 : i32
    return %c0_i32, %c0_i32_0 : i32, i32
  }
  func.func @transform_8(%arg0: i32) -> (i32, i32) {
    %c0_i32 = arith.constant 0 : i32
    %c0_i32_0 = arith.constant 0 : i32
    return %arg0, %c0_i32 : i32, i32
  }
}

</mosaic_0001>

<llo_original>
// kernel: tpu_custom_call.1
$region0: #{tpu_custom_call.1}
  #allocation0 [shape = 'u32[]', space=smem, size = 0x4, offset = 0x4, fixed_abs, tag = 'smem constant byte address 0x4 - core index']
  #allocation1 [shape = 'u32[144,128]{1,0:T(1,128)}', space=vmem, size = 0x12000, scoped, tag = 'internal scratch']
  #allocation2 [shape = 'f32[1,1]{1,0:T(1,128)S(6)}', space=smem, size = 0x200, scoped, tag = 'scoped memory for tpu_custom_call.1']
  %s0 = inlined_call_operand.vmem [shape: f32[64,32], index: 0, kind: input, shape index: {}]
  %s1 = inlined_call_operand.vmem [shape: bf16[32,256], index: 1, kind: input, shape index: {}]
  %s2 = inlined_call_operand.vmem [shape: f32[1,256], index: 2, kind: input, shape index: {}]
  %s3 = inlined_call_operand.hbm [shape: bf16[256,128], index: 3, kind: input, shape index: {}]
  %s4 = inlined_call_operand.vmem [shape: f32[1,128], index: 4, kind: input, shape index: {}]
  %s5 = inlined_call_operand.hbm [shape: bf16[128,512], index: 5, kind: input, shape index: {}]
  %s6 = inlined_call_operand.vmem [shape: f32[1,512], index: 6, kind: input, shape index: {}]
  %s7 = inlined_call_operand.<no memory space> [shape: f32[1,1], index: 7, kind: input, shape index: {}]
  %s8 = inlined_call_operand.hbm [shape: f32[64,512], index: 8, kind: output, shape index: {}]
  %s9 = sld [smem:[#allocation0]]
  $region50: #{tpu_custom_call.1} parent=0
    _
  %s11 = ssub.s32 1, %s9
  %s12 = scalar_select 0, %s11, %s9
  %13 = sst [smem:[#allocation2]] %s7
  $region1: #{tpu_custom_call.1} parent=0
    #allocation3 [shape = 'u8[65536]{0}', space=vmem, size = 0x10000, scoped, tag = 'input window, operand 3, single buffered']
    #allocation4 [shape = 's32[1]{0}', space=sflag, size = 0x4, scoped, tag = 'scoped memory for tpu_custom_call.1']
    #allocation5 [shape = 's32[1]{0}', space=sflag, size = 0x4, scoped, tag = 'scoped memory for tpu_custom_call.1']
    #allocation6 [shape = 'u8[131072]{0}', space=vmem, size = 0x20000, scoped, tag = 'input window, operand 5, single buffered']
    #allocation7 [shape = 's32[1]{0}', space=sflag, size = 0x4, scoped, tag = 'scoped memory for tpu_custom_call.1']
    #allocation8 [shape = 'u8[131072]{0}', space=vmem, size = 0x20000, scoped, tag = 'output window, operand 0, single buffered']
    %14 = vsyncpa [#allocation4], 0
    %15 = vsyncpa [#allocation7], 0
    %16 = vsyncpa [#allocation5], 0
    // Predicated region
    $region2: #{tpu_custom_call.1} parent=1 // pred_check
      _
    $region3: #{tpu_custom_call.1} parent=1 // pred_check_branch
      %18 = sbr.rel (0) target = $region5
    $region4: #{tpu_custom_call.1} parent=1 // pred_region
      _
    $region5: #{tpu_custom_call.1} parent=1 // pred_fallthru
      _
    // Predicated region
    $region6: #{tpu_custom_call.1} parent=1 // pred_check
      _
    $region7: #{tpu_custom_call.1} parent=1 // pred_check_branch
      %20 = sbr.rel (0) target = $region9
    $region8: #{tpu_custom_call.1} parent=1 // pred_region
      _
    $region9: #{tpu_custom_call.1} parent=1 // pred_fallthru
      _
    // Predicated region
    $region10: #{tpu_custom_call.1} parent=1 // pred_check
      _
    $region11: #{tpu_custom_call.1} parent=1 // pred_check_branch
      %22 = sbr.rel (0) target = $region13
    $region12: #{tpu_custom_call.1} parent=1 // pred_region
      _
    $region13: #{tpu_custom_call.1} parent=1 // pred_fallthru
      _
    // Predicated region
    $region14: #{tpu_custom_call.1} parent=1 // pred_check
      _
    $region15: #{tpu_custom_call.1} parent=1 // pred_check_branch
      %24 = sbr.rel (0) target = $region17
    $region16: #{tpu_custom_call.1} parent=1 // pred_region
      %s26 = ssub.s32 2048, 2048
      %27 = vsyncadd [#allocation4], %s26
      %s28 = sshll.u32 [#allocation3], 4
      %s29 = int_to_ptr.vmem [resolvable:$true] %s28
      %34 = dma.hbm_to_vmem [thread:$0]  %s3, 2048, %s29, [#allocation4], 64, 64, 4
    $region17: #{tpu_custom_call.1} parent=1 // pred_fallthru
      _
    // Predicated region
    $region18: #{tpu_custom_call.1} parent=1 // pred_check
      _
    $region19: #{tpu_custom_call.1} parent=1 // pred_check_branch
      %36 = sbr.rel (0) target = $region21
    $region20: #{tpu_custom_call.1} parent=1 // pred_region
      _
    $region21: #{tpu_custom_call.1} parent=1 // pred_fallthru
      _
    // Predicated region
    $region22: #{tpu_custom_call.1} parent=1 // pred_check
      _
    $region23: #{tpu_custom_call.1} parent=1 // pred_check_branch
      %38 = sbr.rel (0) target = $region25
    $region24: #{tpu_custom_call.1} parent=1 // pred_region
      %s40 = ssub.s32 4096, 4096
      %41 = vsyncadd [#allocation7], %s40
      %s42 = sshll.u32 [#allocation6], 4
      %s43 = int_to_ptr.vmem [resolvable:$true] %s42
      %48 = dma.hbm_to_vmem [thread:$0]  %s5, 4096, %s43, [#allocation7], 256, 256, 16
    $region25: #{tpu_custom_call.1} parent=1 // pred_fallthru
      _
    // Predicated region
    $region26: #{tpu_custom_call.1} parent=1 // pred_check
      _
    $region27: #{tpu_custom_call.1} parent=1 // pred_check_branch
      %50 = sbr.rel (0) target = $region29
    $region28: #{tpu_custom_call.1} parent=1 // pred_region
      _
    $region29: #{tpu_custom_call.1} parent=1 // pred_fallthru
      _
    // Predicated region
    $region30: #{tpu_custom_call.1} parent=1 // pred_check
      _
    $region31: #{tpu_custom_call.1} parent=1 // pred_check_branch
      %52 = sbr.rel (0) target = $region33
    $region32: #{tpu_custom_call.1} parent=1 // pred_region
      _
    $region33: #{tpu_custom_call.1} parent=1 // pred_fallthru
      _
    // Predicated region
    $region34: #{tpu_custom_call.1} parent=1 // pred_check
      _
    $region35: #{tpu_custom_call.1} parent=1 // pred_check_branch
      %54 = sbr.rel (0) target = $region37
    $region36: #{tpu_custom_call.1} parent=1 // pred_region
      %55 = dma.done [#allocation4], 2048
    $region37: #{tpu_custom_call.1} parent=1 // pred_fallthru
      _
    // Predicated region
    $region38: #{tpu_custom_call.1} parent=1 // pred_check
      _
    $region39: #{tpu_custom_call.1} parent=1 // pred_check_branch
      %57 = sbr.rel (0) target = $region41
    $region40: #{tpu_custom_call.1} parent=1 // pred_region
      %58 = dma.done [#allocation7], 4096
    $region41: #{tpu_custom_call.1} parent=1 // pred_fallthru
      _
    %s60 = sld [smem:[#allocation2]]
    %v61 = vld [vmem:[%s0] sm:$0xff]
    %v62 = vld [vmem:[%s0 + $0x8] sm:$0xff]
    %v63 = vld [vmem:[%s0 + $0x10] sm:$0xff]
    %v64 = vld [vmem:[%s0 + $0x18] sm:$0xff]
    %v65 = vld [vmem:[%s0 + $0x20] sm:$0xff]
    %v66 = vld [vmem:[%s0 + $0x28] sm:$0xff]
    %v67 = vld [vmem:[%s0 + $0x30] sm:$0xff]
    %v68 = vld [vmem:[%s0 + $0x38] sm:$0xff]
    %v69 = vpack.c.bf16 %v62, %v61
    %v70 = vpack.c.bf16 %v64, %v63
    %v71 = vpack.c.bf16 %v66, %v65
    %v72 = vpack.c.bf16 %v68, %v67
    %v73 = vld [vmem:[%s1] sm:$0xff]
    %v74 = vld [vmem:[%s1 + $0x8] sm:$0xff]
    %v75 = vld [vmem:[%s1 + $0x10] sm:$0xff]
    %v76 = vld [vmem:[%s1 + $0x18] sm:$0xff]
    %v77 = vld [vmem:[%s2] sm:$0x3]
    %v79 = vlaneseq
    %v80 = vshrl.u32 %v79, 7
    %v81 = vsub.s32 0, %v80
    %v82 = vrot.slane %v77, %v81
    %v83 = vlaneseq
    %v84 = vshrl.u32 %v83, 7
    %v85 = vsub.s32 1, %v84
    %v86 = vrot.slane %v77, %v85
    %v93 = vunpack.c.l.b16 %v73
    %v94 = vunpack.c.h.b16 %v73
    %v95 = vunpack.c.l.b16 %v74
    %v96 = vunpack.c.h.b16 %v74
    %v97 = vunpack.c.l.b16 %v75
    %v98 = vunpack.c.h.b16 %v75
    %v99 = vunpack.c.l.b16 %v76
    %v100 = vunpack.c.h.b16 %v76
    %v101 = vpack.c.b16 %v95, %v93
    %v102 = vpack.c.b16 %v96, %v94
    %v103 = vpack.c.b16 %v99, %v97
    %v104 = vpack.c.b16 %v100, %v98
    %vm109 = vcmask 261120
    %v111 = vsel %vm109, %v69, 0
    %v114 = vsel %vm109, %v70, 0
    %v117 = vsel %vm109, %v71, 0
    %v120 = vsel %vm109, %v72, 0
    %122 = vmatprep.subr.bf16.mxu0 %v102
    %123 = vmatpush1.bf16.msra.mxu0 %v101
    %124 = vmatprep.subr.bf16.mxu0 %v104
    %125 = vmatpush1.bf16.msra.mxu0 %v103
    %126 = vmatprep.subr.bf16.mxu0 0
    %127 = vmatpush1.bf16.msra.mxu0 0
    %128 = vmatprep.subr.bf16.mxu0 0
    %129 = vmatpush1.bf16.msra.mxu0 0
    %130 = vmatprep.subr.bf16.mxu0 0
    %131 = vmatpush1.bf16.msra.mxu0 0
    %132 = vmatprep.subr.bf16.mxu0 0
    %133 = vmatpush1.bf16.msra.mxu0 0
    %134 = vmatprep.subr.bf16.mxu0 0
    %135 = vmatpush1.bf16.msra.mxu0 0
    %136 = vmatprep.subr.bf16.mxu0 0
    %137 = vmatpush1.bf16.msra.mxu0 0
    %138 = vmatprep.subr.bf16.mxu0 0
    %139 = vmatpush1.bf16.msra.mxu0 0
    %140 = vmatprep.subr.bf16.mxu0 0
    %141 = vmatpush1.bf16.msra.mxu0 0
    %142 = vmatprep.subr.bf16.mxu0 0
    %143 = vmatpush1.bf16.msra.mxu0 0
    %144 = vmatprep.subr.bf16.mxu0 0
    %145 = vmatpush1.bf16.msra.mxu0 0
    %146 = vmatprep.subr.bf16.mxu0 0
    %147 = vmatpush1.bf16.msra.mxu0 0
    %148 = vmatprep.subr.bf16.mxu0 0
    %149 = vmatpush1.bf16.msra.mxu0 0
    %150 = vmatprep.subr.bf16.mxu0 0
    %151 = vmatpush1.bf16.msra.mxu0 0
    %152 = vmatprep.subr.bf16.mxu0 0
    %153 = vmatpush1.bf16.msra.mxu0 0
    %154 = vmatprep.mubr.bf16.mxu0 0
    %155 = vmatmul.mubr.bf16.gmra.mrb[0].mxu0 %v111
    %v156 = vpop.f32.mrb[0].mxu0
    %v157 = vadd.f32 %v82, %v156
    %v158 = vpop.f32.mrb[0].mxu0
    %v159 = vadd.f32 %v86, %v158
    %v160 = vpop.f32.mrb[0].mxu0
    %v161 = vadd.f32 %v82, %v160
    %v162 = vpop.f32.mrb[0].mxu0
    %v163 = vadd.f32 %v86, %v162
    %164 = vmatprep.mubr.bf16.mxu0 0
    %165 = vmatmul.mubr.bf16.gmra.mrb[0].mxu0 %v114
    %v166 = vpop.f32.mrb[0].mxu0
    %v167 = vadd.f32 %v82, %v166
    %v168 = vpop.f32.mrb[0].mxu0
    %v169 = vadd.f32 %v86, %v168
    %v170 = vpop.f32.mrb[0].mxu0
    %v171 = vadd.f32 %v82, %v170
    %v172 = vpop.f32.mrb[0].mxu0
    %v173 = vadd.f32 %v86, %v172
    %174 = vmatprep.mubr.bf16.mxu0 0
    %175 = vmatmul.mubr.bf16.gmra.mrb[0].mxu0 %v117
    %v176 = vpop.f32.mrb[0].mxu0
    %v177 = vadd.f32 %v82, %v176
    %v178 = vpop.f32.mrb[0].mxu0
    %v179 = vadd.f32 %v86, %v178
    %v180 = vpop.f32.mrb[0].mxu0
    %v181 = vadd.f32 %v82, %v180
    %v182 = vpop.f32.mrb[0].mxu0
    %v183 = vadd.f32 %v86, %v182
    %184 = vmatprep.mubr.bf16.mxu0 0
    %185 = vmatmul.mubr.bf16.gmra.mrb[0].mxu0 %v120
    %v186 = vpop.f32.mrb[0].mxu0
    %v187 = vadd.f32 %v82, %v186
    %v188 = vpop.f32.mrb[0].mxu0
    %v189 = vadd.f32 %v86, %v188
    %v190 = vpop.f32.mrb[0].mxu0
    %v191 = vadd.f32 %v82, %v190
    %v192 = vpop.f32.mrb[0].mxu0
    %v193 = vadd.f32 %v86, %v192
    %194 = vdwg.mxu0
    %vm195 = vcmp.gt.f32.partialorder %v157, 0.0
    %vm196 = vcmp.gt.f32.partialorder %v159, 0.0
    %vm197 = vcmp.gt.f32.partialorder %v161, 0.0
    %vm198 = vcmp.gt.f32.partialorder %v163, 0.0
    %vm199 = vcmp.gt.f32.partialorder %v167, 0.0
    %vm200 = vcmp.gt.f32.partialorder %v169, 0.0
    %vm201 = vcmp.gt.f32.partialorder %v171, 0.0
    %vm202 = vcmp.gt.f32.partialorder %v173, 0.0
    %vm203 = vcmp.gt.f32.partialorder %v177, 0.0
    %vm204 = vcmp.gt.f32.partialorder %v179, 0.0
    %vm205 = vcmp.gt.f32.partialorder %v181, 0.0
    %vm206 = vcmp.gt.f32.partialorder %v183, 0.0
    %vm207 = vcmp.gt.f32.partialorder %v187, 0.0
    %vm208 = vcmp.gt.f32.partialorder %v189, 0.0
    %vm209 = vcmp.gt.f32.partialorder %v191, 0.0
    %vm210 = vcmp.gt.f32.partialorder %v193, 0.0
    %v211 = vstv %s60
    %v212 = vmul.f32 %v211, %v157
    %v213 = vmul.f32 %v211, %v159
    %v214 = vmul.f32 %v211, %v161
    %v215 = vmul.f32 %v211, %v163
    %v216 = vmul.f32 %v211, %v167
    %v217 = vmul.f32 %v211, %v169
    %v218 = vmul.f32 %v211, %v171
    %v219 = vmul.f32 %v211, %v173
    %v220 = vmul.f32 %v211, %v177
    %v221 = vmul.f32 %v211, %v179
    %v222 = vmul.f32 %v211, %v181
    %v223 = vmul.f32 %v211, %v183
    %v224 = vmul.f32 %v211, %v187
    %v225 = vmul.f32 %v211, %v189
    %v226 = vmul.f32 %v211, %v191
    %v227 = vmul.f32 %v211, %v193
    %v228 = vsel %vm195, %v157, %v212
    %v229 = vsel %vm196, %v159, %v213
    %v230 = vsel %vm197, %v161, %v214
    %v231 = vsel %vm198, %v163, %v215
    %v232 = vsel %vm199, %v167, %v216
    %v233 = vsel %vm200, %v169, %v217
    %v234 = vsel %vm201, %v171, %v218
    %v235 = vsel %vm202, %v173, %v219
    %v236 = vsel %vm203, %v177, %v220
    %v237 = vsel %vm204, %v179, %v221
    %v238 = vsel %vm205, %v181, %v222
    %v239 = vsel %vm206, %v183, %v223
    %v240 = vsel %vm207, %v187, %v224
    %v241 = vsel %vm208, %v189, %v225
    %v242 = vsel %vm209, %v191, %v226
    %v243 = vsel %vm210, %v193, %v227
    %v244 = vpack.c.bf16 %v230, %v228
    %v245 = vpack.c.bf16 %v231, %v229
    %v246 = vpack.c.bf16 %v234, %v232
    %v247 = vpack.c.bf16 %v235, %v233
    %v248 = vpack.c.bf16 %v238, %v236
    %v249 = vpack.c.bf16 %v239, %v237
    %v250 = vpack.c.bf16 %v242, %v240
    %v251 = vpack.c.bf16 %v243, %v241
    %v252 = vld [vmem:[#allocation3] sm:$0xf]
    %v253 = vld [vmem:[#allocation3 + $0x4] sm:$0xf]
    %v254 = vld [vmem:[#allocation3 + $0x8] sm:$0xf]
    %v255 = vld [vmem:[#allocation3 + $0xc] sm:$0xf]
    %v256 = vld [vmem:[#allocation3 + $0x10] sm:$0xf]
    %v257 = vld [vmem:[#allocation3 + $0x14] sm:$0xf]
    %v258 = vld [vmem:[#allocation3 + $0x18] sm:$0xf]
    %v259 = vld [vmem:[#allocation3 + $0x1c] sm:$0xf]
    %v260 = vld [vmem:[#allocation3 + $0x20] sm:$0xf]
    %v261 = vld [vmem:[#allocation3 + $0x24] sm:$0xf]
    %v262 = vld [vmem:[#allocation3 + $0x28] sm:$0xf]
    %v263 = vld [vmem:[#allocation3 + $0x2c] sm:$0xf]
    %v264 = vld [vmem:[#allocation3 + $0x30] sm:$0xf]
    %v265 = vld [vmem:[#allocation3 + $0x34] sm:$0xf]
    %v266 = vld [vmem:[#allocation3 + $0x38] sm:$0xf]
    %v267 = vld [vmem:[#allocation3 + $0x3c] sm:$0xf]
    %v268 = vld [vmem:[#allocation3 + $0x40] sm:$0xf]
    %v269 = vld [vmem:[#allocation3 + $0x44] sm:$0xf]
    %v270 = vld [vmem:[#allocation3 + $0x48] sm:$0xf]
    %v271 = vld [vmem:[#allocation3 + $0x4c] sm:$0xf]
    %v272 = vld [vmem:[#allocation3 + $0x50] sm:$0xf]
    %v273 = vld [vmem:[#allocation3 + $0x54] sm:$0xf]
    %v274 = vld [vmem:[#allocation3 + $0x58] sm:$0xf]
    %v275 = vld [vmem:[#allocation3 + $0x5c] sm:$0xf]
    %v276 = vld [vmem:[#allocation3 + $0x60] sm:$0xf]
    %v277 = vld [vmem:[#allocation3 + $0x64] sm:$0xf]
    %v278 = vld [vmem:[#allocation3 + $0x68] sm:$0xf]
    %v279 = vld [vmem:[#allocation3 + $0x6c] sm:$0xf]
    %v280 = vld [vmem:[#allocation3 + $0x70] sm:$0xf]
    %v281 = vld [vmem:[#allocation3 + $0x74] sm:$0xf]
    %v282 = vld [vmem:[#allocation3 + $0x78] sm:$0xf]
    %v283 = vld [vmem:[#allocation3 + $0x7c] sm:$0xf]
    %v284 = vld [vmem:[%s4] sm:$0x1]
    %v286 = vlaneseq
    %v287 = vshrl.u32 %v286, 7
    %v288 = vsub.s32 0, %v287
    %v289 = vrot.slane %v284, %v288
    %v323 = vunpack.c.l.b16 %v252
    %v324 = vunpack.c.l.b16 %v253
    %v325 = vunpack.c.l.b16 %v254
    %v326 = vunpack.c.l.b16 %v255
    %v327 = vunpack.c.l.b16 %v256
    %v328 = vunpack.c.l.b16 %v257
    %v329 = vunpack.c.l.b16 %v258
    %v330 = vunpack.c.l.b16 %v259
    %v331 = vunpack.c.l.b16 %v260
    %v332 = vunpack.c.l.b16 %v261
    %v333 = vunpack.c.l.b16 %v262
    %v334 = vunpack.c.l.b16 %v263
    %v335 = vunpack.c.l.b16 %v264
    %v336 = vunpack.c.l.b16 %v265
    %v337 = vunpack.c.l.b16 %v266
    %v338 = vunpack.c.l.b16 %v267
    %v339 = vunpack.c.l.b16 %v268
    %v340 = vunpack.c.l.b16 %v269
    %v341 = vunpack.c.l.b16 %v270
    %v342 = vunpack.c.l.b16 %v271
    %v343 = vunpack.c.l.b16 %v272
    %v344 = vunpack.c.l.b16 %v273
    %v345 = vunpack.c.l.b16 %v274
    %v346 = vunpack.c.l.b16 %v275
    %v347 = vunpack.c.l.b16 %v276
    %v348 = vunpack.c.l.b16 %v277
    %v349 = vunpack.c.l.b16 %v278
    %v350 = vunpack.c.l.b16 %v279
    %v351 = vunpack.c.l.b16 %v280
    %v352 = vunpack.c.l.b16 %v281
    %v353 = vunpack.c.l.b16 %v282
    %v354 = vunpack.c.l.b16 %v283
    %v355 = vpack.c.b16 %v324, %v323
    %v356 = vpack.c.b16 %v326, %v325
    %v357 = vpack.c.b16 %v328, %v327
    %v358 = vpack.c.b16 %v330, %v329
    %v359 = vpack.c.b16 %v332, %v331
    %v360 = vpack.c.b16 %v334, %v333
    %v361 = vpack.c.b16 %v336, %v335
    %v362 = vpack.c.b16 %v338, %v337
    %v363 = vpack.c.b16 %v340, %v339
    %v364 = vpack.c.b16 %v342, %v341
    %v365 = vpack.c.b16 %v344, %v343
    %v366 = vpack.c.b16 %v346, %v345
    %v367 = vpack.c.b16 %v348, %v347
    %v368 = vpack.c.b16 %v350, %v349
    %v369 = vpack.c.b16 %v352, %v351
    %v370 = vpack.c.b16 %v354, %v353
    %387 = vmatprep.subr.bf16.mxu0 0
    %388 = vmatpush1.bf16.msra.mxu0 %v355
    %389 = vmatprep.subr.bf16.mxu0 0
    %390 = vmatpush1.bf16.msra.mxu0 %v356
    %391 = vmatprep.subr.bf16.mxu0 0
    %392 = vmatpush1.bf16.msra.mxu0 %v357
    %393 = vmatprep.subr.bf16.mxu0 0
    %394 = vmatpush1.bf16.msra.mxu0 %v358
    %395 = vmatprep.subr.bf16.mxu0 0
    %396 = vmatpush1.bf16.msra.mxu0 %v359
    %397 = vmatprep.subr.bf16.mxu0 0
    %398 = vmatpush1.bf16.msra.mxu0 %v360
    %399 = vmatprep.subr.bf16.mxu0 0
    %400 = vmatpush1.bf16.msra.mxu0 %v361
    %401 = vmatprep.subr.bf16.mxu0 0
    %402 = vmatpush1.bf16.msra.mxu0 %v362
    %403 = vmatprep.subr.bf16.mxu0 0
    %404 = vmatpush1.bf16.msra.mxu0 %v363
    %405 = vmatprep.subr.bf16.mxu0 0
    %406 = vmatpush1.bf16.msra.mxu0 %v364
    %407 = vmatprep.subr.bf16.mxu0 0
    %408 = vmatpush1.bf16.msra.mxu0 %v365
    %409 = vmatprep.subr.bf16.mxu0 0
    %410 = vmatpush1.bf16.msra.mxu0 %v366
    %411 = vmatprep.subr.bf16.mxu0 0
    %412 = vmatpush1.bf16.msra.mxu0 %v367
    %413 = vmatprep.subr.bf16.mxu0 0
    %414 = vmatpush1.bf16.msra.mxu0 %v368
    %415 = vmatprep.subr.bf16.mxu0 0
    %416 = vmatpush1.bf16.msra.mxu0 %v369
    %417 = vmatprep.subr.bf16.mxu0 0
    %418 = vmatpush1.bf16.msra.mxu0 %v370
    %419 = vmatprep.mubr.bf16.mxu0 %v245
    %420 = vmatmul.mubr.bf16.gmra.mrb[0].mxu0 %v244
    %v421 = vpop.f32.mrb[0].mxu0
    %v422 = vadd.f32 %v289, %v421
    %v423 = vpop.f32.mrb[0].mxu0
    %v424 = vpop.f32.mrb[0].mxu0
    %v425 = vadd.f32 %v289, %v424
    %v426 = vpop.f32.mrb[0].mxu0
    %427 = vmatprep.mubr.bf16.mxu0 %v247
    %428 = vmatmul.mubr.bf16.gmra.mrb[0].mxu0 %v246
    %v429 = vpop.f32.mrb[0].mxu0
    %v430 = vadd.f32 %v289, %v429
    %v431 = vpop.f32.mrb[0].mxu0
    %v432 = vpop.f32.mrb[0].mxu0
    %v433 = vadd.f32 %v289, %v432
    %v434 = vpop.f32.mrb[0].mxu0
    %435 = vmatprep.mubr.bf16.mxu0 %v249
    %436 = vmatmul.mubr.bf16.gmra.mrb[0].mxu0 %v248
    %v437 = vpop.f32.mrb[0].mxu0
    %v438 = vadd.f32 %v289, %v437
    %v439 = vpop.f32.mrb[0].mxu0
    %v440 = vpop.f32.mrb[0].mxu0
    %v441 = vadd.f32 %v289, %v440
    %v442 = vpop.f32.mrb[0].mxu0
    %443 = vmatprep.mubr.bf16.mxu0 %v251
    %444 = vmatmul.mubr.bf16.gmra.mrb[0].mxu0 %v250
    %v445 = vpop.f32.mrb[0].mxu0
    %v446 = vadd.f32 %v289, %v445
    %v447 = vpop.f32.mrb[0].mxu0
    %v448 = vpop.f32.mrb[0].mxu0
    %v449 = vadd.f32 %v289, %v448
    %v450 = vpop.f32.mrb[0].mxu0
    %451 = vdwg.mxu0
    %v452 = vpack.c.bf16 %v425, %v422
    %v453 = vpack.c.bf16 %v433, %v430
    %v454 = vpack.c.bf16 %v441, %v438
    %v455 = vpack.c.bf16 %v449, %v446
    %v456 = vld [vmem:[#allocation6] sm:$0xff]
    %v457 = vld [vmem:[#allocation6 + $0x8] sm:$0xff]
    %v458 = vld [vmem:[#allocation6 + $0x10] sm:$0xff]
    %v459 = vld [vmem:[#allocation6 + $0x18] sm:$0xff]
    %v460 = vld [vmem:[#allocation6 + $0x20] sm:$0xff]
    %v461 = vld [vmem:[#allocation6 + $0x28] sm:$0xff]
    %v462 = vld [vmem:[#allocation6 + $0x30] sm:$0xff]
    %v463 = vld [vmem:[#allocation6 + $0x38] sm:$0xff]
    %v464 = vld [vmem:[#allocation6 + $0x40] sm:$0xff]
    %v465 = vld [vmem:[#allocation6 + $0x48] sm:$0xff]
    %v466 = vld [vmem:[#allocation6 + $0x50] sm:$0xff]
    %v467 = vld [vmem:[#allocation6 + $0x58] sm:$0xff]
    %v468 = vld [vmem:[#allocation6 + $0x60] sm:$0xff]
    %v469 = vld [vmem:[#allocation6 + $0x68] sm:$0xff]
    %v470 = vld [vmem:[#allocation6 + $0x70] sm:$0xff]
    %v471 = vld [vmem:[#allocation6 + $0x78] sm:$0xff]
    %v472 = vld [vmem:[#allocation6 + $0x80] sm:$0xff]
    %v473 = vld [vmem:[#allocation6 + $0x88] sm:$0xff]
    %v474 = vld [vmem:[#allocation6 + $0x90] sm:$0xff]
    %v475 = vld [vmem:[#allocation6 + $0x98] sm:$0xff]
    %v476 = vld [vmem:[#allocation6 + $0xa0] sm:$0xff]
    %v477 = vld [vmem:[#allocation6 + $0xa8] sm:$0xff]
    %v478 = vld [vmem:[#allocation6 + $0xb0] sm:$0xff]
    %v479 = vld [vmem:[#allocation6 + $0xb8] sm:$0xff]
    %v480 = vld [vmem:[#allocation6 + $0xc0] sm:$0xff]
    %v481 = vld [vmem:[#allocation6 + $0xc8] sm:$0xff]
    %v482 = vld [vmem:[#allocation6 + $0xd0] sm:$0xff]
    %v483 = vld [vmem:[#allocation6 + $0xd8] sm:$0xff]
    %v484 = vld [vmem:[#allocation6 + $0xe0] sm:$0xff]
    %v485 = vld [vmem:[#allocation6 + $0xe8] sm:$0xff]
    %v486 = vld [vmem:[#allocation6 + $0xf0] sm:$0xff]
    %v487 = vld [vmem:[#allocation6 + $0xf8] sm:$0xff]
    %v488 = vld [vmem:[%s6] sm:$0xf]
    %v490 = vlaneseq
    %v491 = vshrl.u32 %v490, 7
    %v492 = vsub.s32 0, %v491
    %v493 = vrot.slane %v488, %v492
    %v494 = vlaneseq
    %v495 = vshrl.u32 %v494, 7
    %v496 = vsub.s32 1, %v495
    %v497 = vrot.slane %v488, %v496
    %v498 = vlaneseq
    %v499 = vshrl.u32 %v498, 7
    %v500 = vsub.s32 2, %v499
    %v501 = vrot.slane %v488, %v500
    %v502 = vlaneseq
    %v503 = vshrl.u32 %v502, 7
    %v504 = vsub.s32 3, %v503
    %v505 = vrot.slane %v488, %v504
    %v542 = vunpack.c.l.b16 %v456
    %v543 = vunpack.c.h.b16 %v456
    %v544 = vunpack.c.l.b16 %v457
    %v545 = vunpack.c.h.b16 %v457
    %v546 = vunpack.c.l.b16 %v458
    %v547 = vunpack.c.h.b16 %v458
    %v548 = vunpack.c.l.b16 %v459
    %v549 = vunpack.c.h.b16 %v459
    %v550 = vunpack.c.l.b16 %v460
    %v551 = vunpack.c.h.b16 %v460
    %v552 = vunpack.c.l.b16 %v461
    %v553 = vunpack.c.h.b16 %v461
    %v554 = vunpack.c.l.b16 %v462
    %v555 = vunpack.c.h.b16 %v462
    %v556 = vunpack.c.l.b16 %v463
    %v557 = vunpack.c.h.b16 %v463
    %v558 = vunpack.c.l.b16 %v464
    %v559 = vunpack.c.h.b16 %v464
    %v560 = vunpack.c.l.b16 %v465
    %v561 = vunpack.c.h.b16 %v465
    %v562 = vunpack.c.l.b16 %v466
    %v563 = vunpack.c.h.b16 %v466
    %v564 = vunpack.c.l.b16 %v467
    %v565 = vunpack.c.h.b16 %v467
    %v566 = vunpack.c.l.b16 %v468
    %v567 = vunpack.c.h.b16 %v468
    %v568 = vunpack.c.l.b16 %v469
    %v569 = vunpack.c.h.b16 %v469
    %v570 = vunpack.c.l.b16 %v470
    %v571 = vunpack.c.h.b16 %v470
    %v572 = vunpack.c.l.b16 %v471
    %v573 = vunpack.c.h.b16 %v471
    %v574 = vunpack.c.l.b16 %v472
    %v575 = vunpack.c.h.b16 %v472
    %v576 = vunpack.c.l.b16 %v473
    %v577 = vunpack.c.h.b16 %v473
    %v578 = vunpack.c.l.b16 %v474
    %v579 = vunpack.c.h.b16 %v474
    %v580 = vunpack.c.l.b16 %v475
    %v581 = vunpack.c.h.b16 %v475
    %v582 = vunpack.c.l.b16 %v476
    %v583 = vunpack.c.h.b16 %v476
    %v584 = vunpack.c.l.b16 %v477
    %v585 = vunpack.c.h.b16 %v477
    %v586 = vunpack.c.l.b16 %v478
    %v587 = vunpack.c.h.b16 %v478
    %v588 = vunpack.c.l.b16 %v479
    %v589 = vunpack.c.h.b16 %v479
    %v590 = vunpack.c.l.b16 %v480
    %v591 = vunpack.c.h.b16 %v480
    %v592 = vunpack.c.l.b16 %v481
    %v593 = vunpack.c.h.b16 %v481
    %v594 = vunpack.c.l.b16 %v482
    %v595 = vunpack.c.h.b16 %v482
    %v596 = vunpack.c.l.b16 %v483
    %v597 = vunpack.c.h.b16 %v483
    %v598 = vunpack.c.l.b16 %v484
    %v599 = vunpack.c.h.b16 %v484
    %v600 = vunpack.c.l.b16 %v485
    %v601 = vunpack.c.h.b16 %v485
    %v602 = vunpack.c.l.b16 %v486
    %v603 = vunpack.c.h.b16 %v486
    %v604 = vunpack.c.l.b16 %v487
    %v605 = vunpack.c.h.b16 %v487
    %v606 = vpack.c.b16 %v546, %v542
    %v607 = vpack.c.b16 %v547, %v543
    %v608 = vpack.c.b16 %v548, %v544
    %v609 = vpack.c.b16 %v549, %v545
    %v610 = vpack.c.b16 %v554, %v550
    %v611 = vpack.c.b16 %v555, %v551
    %v612 = vpack.c.b16 %v556, %v552
    %v613 = vpack.c.b16 %v557, %v553
    %v614 = vpack.c.b16 %v562, %v558
    %v615 = vpack.c.b16 %v563, %v559
    %v616 = vpack.c.b16 %v564, %v560
    %v617 = vpack.c.b16 %v565, %v561
    %v618 = vpack.c.b16 %v570, %v566
    %v619 = vpack.c.b16 %v571, %v567
    %v620 = vpack.c.b16 %v572, %v568
    %v621 = vpack.c.b16 %v573, %v569
    %v622 = vpack.c.b16 %v578, %v574
    %v623 = vpack.c.b16 %v579, %v575
    %v624 = vpack.c.b16 %v580, %v576
    %v625 = vpack.c.b16 %v581, %v577
    %v626 = vpack.c.b16 %v586, %v582
    %v627 = vpack.c.b16 %v587, %v583
    %v628 = vpack.c.b16 %v588, %v584
    %v629 = vpack.c.b16 %v589, %v585
    %v630 = vpack.c.b16 %v594, %v590
    %v631 = vpack.c.b16 %v595, %v591
    %v632 = vpack.c.b16 %v596, %v592
    %v633 = vpack.c.b16 %v597, %v593
    %v634 = vpack.c.b16 %v602, %v598
    %v635 = vpack.c.b16 %v603, %v599
    %v636 = vpack.c.b16 %v604, %v600
    %v637 = vpack.c.b16 %v605, %v601
    %670 = vmatprep.subr.bf16.mxu0 %v607
    %671 = vmatpush1.bf16.msra.mxu0 %v606
    %672 = vmatprep.subr.bf16.mxu0 %v611
    %673 = vmatpush1.bf16.msra.mxu0 %v610
    %674 = vmatprep.subr.bf16.mxu0 %v615
    %675 = vmatpush1.bf16.msra.mxu0 %v614
    %676 = vmatprep.subr.bf16.mxu0 %v619
    %677 = vmatpush1.bf16.msra.mxu0 %v618
    %678 = vmatprep.subr.bf16.mxu0 %v623
    %679 = vmatpush1.bf16.msra.mxu0 %v622
    %680 = vmatprep.subr.bf16.mxu0 %v627
    %681 = vmatpush1.bf16.msra.mxu0 %v626
    %682 = vmatprep.subr.bf16.mxu0 %v631
    %683 = vmatpush1.bf16.msra.mxu0 %v630
    %684 = vmatprep.subr.bf16.mxu0 %v635
    %685 = vmatpush1.bf16.msra.mxu0 %v634
    %686 = vmatprep.subr.bf16.mxu0 0
    %687 = vmatpush1.bf16.msra.mxu0 0
    %688 = vmatprep.subr.bf16.mxu0 0
    %689 = vmatpush1.bf16.msra.mxu0 0
    %690 = vmatprep.subr.bf16.mxu0 0
    %691 = vmatpush1.bf16.msra.mxu0 0
    %692 = vmatprep.subr.bf16.mxu0 0
    %693 = vmatpush1.bf16.msra.mxu0 0
    %694 = vmatprep.subr.bf16.mxu0 0
    %695 = vmatpush1.bf16.msra.mxu0 0
    %696 = vmatprep.subr.bf16.mxu0 0
    %697 = vmatpush1.bf16.msra.mxu0 0
    %698 = vmatprep.subr.bf16.mxu0 0
    %699 = vmatpush1.bf16.msra.mxu0 0
    %700 = vmatprep.subr.bf16.mxu0 0
    %701 = vmatpush1.bf16.msra.mxu0 0
    %702 = vmatprep.mubr.bf16.mxu0 0
    %703 = vmatmul.mubr.bf16.gmra.mrb[0].mxu0 %v452
    %v704 = vpop.f32.mrb[0].mxu0
    %v705 = vadd.f32 %v493, %v704
    %v706 = vpop.f32.mrb[0].mxu0
    %v707 = vadd.f32 %v497, %v706
    %v708 = vpop.f32.mrb[0].mxu0
    %v709 = vadd.f32 %v493, %v708
    %v710 = vpop.f32.mrb[0].mxu0
    %v711 = vadd.f32 %v497, %v710
    %712 = vmatprep.mubr.bf16.mxu0 0
    %713 = vmatmul.mubr.bf16.gmra.mrb[0].mxu0 %v453
    %v714 = vpop.f32.mrb[0].mxu0
    %v715 = vadd.f32 %v493, %v714
    %v716 = vpop.f32.mrb[0].mxu0
    %v717 = vadd.f32 %v497, %v716
    %v718 = vpop.f32.mrb[0].mxu0
    %v719 = vadd.f32 %v493, %v718
    %v720 = vpop.f32.mrb[0].mxu0
    %v721 = vadd.f32 %v497, %v720
    %722 = vmatprep.mubr.bf16.mxu0 0
    %723 = vmatmul.mubr.bf16.gmra.mrb[0].mxu0 %v454
    %v724 = vpop.f32.mrb[0].mxu0
    %v725 = vadd.f32 %v493, %v724
    %v726 = vpop.f32.mrb[0].mxu0
    %v727 = vadd.f32 %v497, %v726
    %v728 = vpop.f32.mrb[0].mxu0
    %v729 = vadd.f32 %v493, %v728
    %v730 = vpop.f32.mrb[0].mxu0
    %v731 = vadd.f32 %v497, %v730
    %732 = vmatprep.mubr.bf16.mxu0 0
    %733 = vmatmul.mubr.bf16.gmra.mrb[0].mxu0 %v455
    %v734 = vpop.f32.mrb[0].mxu0
    %v735 = vadd.f32 %v493, %v734
    %v736 = vpop.f32.mrb[0].mxu0
    %v737 = vadd.f32 %v497, %v736
    %v738 = vpop.f32.mrb[0].mxu0
    %v739 = vadd.f32 %v493, %v738
    %v740 = vpop.f32.mrb[0].mxu0
    %v741 = vadd.f32 %v497, %v740
    %742 = vdwg.mxu0
    %743 = vmatprep.subr.bf16.mxu0 %v609
    %744 = vmatpush1.bf16.msra.mxu0 %v608
    %745 = vmatprep.subr.bf16.mxu0 %v613
    %746 = vmatpush1.bf16.msra.mxu0 %v612
    %747 = vmatprep.subr.bf16.mxu0 %v617
    %748 = vmatpush1.bf16.msra.mxu0 %v616
    %749 = vmatprep.subr.bf16.mxu0 %v621
    %750 = vmatpush1.bf16.msra.mxu0 %v620
    %751 = vmatprep.subr.bf16.mxu0 %v625
    %752 = vmatpush1.bf16.msra.mxu0 %v624
    %753 = vmatprep.subr.bf16.mxu0 %v629
    %754 = vmatpush1.bf16.msra.mxu0 %v628
    %755 = vmatprep.subr.bf16.mxu0 %v633
    %756 = vmatpush1.bf16.msra.mxu0 %v632
    %757 = vmatprep.subr.bf16.mxu0 %v637
    %758 = vmatpush1.bf16.msra.mxu0 %v636
    %759 = vmatprep.subr.bf16.mxu0 0
    %760 = vmatpush1.bf16.msra.mxu0 0
    %761 = vmatprep.subr.bf16.mxu0 0
    %762 = vmatpush1.bf16.msra.mxu0 0
    %763 = vmatprep.subr.bf16.mxu0 0
    %764 = vmatpush1.bf16.msra.mxu0 0
    %765 = vmatprep.subr.bf16.mxu0 0
    %766 = vmatpush1.bf16.msra.mxu0 0
    %767 = vmatprep.subr.bf16.mxu0 0
    %768 = vmatpush1.bf16.msra.mxu0 0
    %769 = vmatprep.subr.bf16.mxu0 0
    %770 = vmatpush1.bf16.msra.mxu0 0
    %771 = vmatprep.subr.bf16.mxu0 0
    %772 = vmatpush1.bf16.msra.mxu0 0
    %773 = vmatprep.subr.bf16.mxu0 0
    %774 = vmatpush1.bf16.msra.mxu0 0
    %775 = vmatprep.mubr.bf16.mxu0 0
    %776 = vmatmul.mubr.bf16.gmra.mrb[0].mxu0 %v452
    %v777 = vpop.f32.mrb[0].mxu0
    %v778 = vadd.f32 %v501, %v777
    %v779 = vpop.f32.mrb[0].mxu0
    %v780 = vadd.f32 %v505, %v779
    %v781 = vpop.f32.mrb[0].mxu0
    %v782 = vadd.f32 %v501, %v781
    %v783 = vpop.f32.mrb[0].mxu0
    %v784 = vadd.f32 %v505, %v783
    %785 = vmatprep.mubr.bf16.mxu0 0
    %786 = vmatmul.mubr.bf16.gmra.mrb[0].mxu0 %v453
    %v787 = vpop.f32.mrb[0].mxu0
    %v788 = vadd.f32 %v501, %v787
    %v789 = vpop.f32.mrb[0].mxu0
    %v790 = vadd.f32 %v505, %v789
    %v791 = vpop.f32.mrb[0].mxu0
    %v792 = vadd.f32 %v501, %v791
    %v793 = vpop.f32.mrb[0].mxu0
    %v794 = vadd.f32 %v505, %v793
    %795 = vmatprep.mubr.bf16.mxu0 0
    %796 = vmatmul.mubr.bf16.gmra.mrb[0].mxu0 %v454
    %v797 = vpop.f32.mrb[0].mxu0
    %v798 = vadd.f32 %v501, %v797
    %v799 = vpop.f32.mrb[0].mxu0
    %v800 = vadd.f32 %v505, %v799
    %v801 = vpop.f32.mrb[0].mxu0
    %v802 = vadd.f32 %v501, %v801
    %v803 = vpop.f32.mrb[0].mxu0
    %v804 = vadd.f32 %v505, %v803
    %805 = vmatprep.mubr.bf16.mxu0 0
    %806 = vmatmul.mubr.bf16.gmra.mrb[0].mxu0 %v455
    %v807 = vpop.f32.mrb[0].mxu0
    %v808 = vadd.f32 %v501, %v807
    %v809 = vpop.f32.mrb[0].mxu0
    %v810 = vadd.f32 %v505, %v809
    %v811 = vpop.f32.mrb[0].mxu0
    %v812 = vadd.f32 %v501, %v811
    %v813 = vpop.f32.mrb[0].mxu0
    %v814 = vadd.f32 %v505, %v813
    %815 = vdwg.mxu0
    %816 = vst [vmem:[#allocation8] sm:$0xff] %v705
    %817 = vst [vmem:[#allocation8 + $0x8] sm:$0xff] %v707
    %818 = vst [vmem:[#allocation8 + $0x10] sm:$0xff] %v778
    %819 = vst [vmem:[#allocation8 + $0x18] sm:$0xff] %v780
    %820 = vst [vmem:[#allocation8 + $0x20] sm:$0xff] %v709
    %821 = vst [vmem:[#allocation8 + $0x28] sm:$0xff] %v711
    %822 = vst [vmem:[#allocation8 + $0x30] sm:$0xff] %v782
    %823 = vst [vmem:[#allocation8 + $0x38] sm:$0xff] %v784
    %824 = vst [vmem:[#allocation8 + $0x40] sm:$0xff] %v715
    %825 = vst [vmem:[#allocation8 + $0x48] sm:$0xff] %v717
    %826 = vst [vmem:[#allocation8 + $0x50] sm:$0xff] %v788
    %827 = vst [vmem:[#allocation8 + $0x58] sm:$0xff] %v790
    %828 = vst [vmem:[#allocation8 + $0x60] sm:$0xff] %v719
    %829 = vst [vmem:[#allocation8 + $0x68] sm:$0xff] %v721
    %830 = vst [vmem:[#allocation8 + $0x70] sm:$0xff] %v792
    %831 = vst [vmem:[#allocation8 + $0x78] sm:$0xff] %v794
    %832 = vst [vmem:[#allocation8 + $0x80] sm:$0xff] %v725
    %833 = vst [vmem:[#allocation8 + $0x88] sm:$0xff] %v727
    %834 = vst [vmem:[#allocation8 + $0x90] sm:$0xff] %v798
    %835 = vst [vmem:[#allocation8 + $0x98] sm:$0xff] %v800
    %836 = vst [vmem:[#allocation8 + $0xa0] sm:$0xff] %v729
    %837 = vst [vmem:[#allocation8 + $0xa8] sm:$0xff] %v731
    %838 = vst [vmem:[#allocation8 + $0xb0] sm:$0xff] %v802
    %839 = vst [vmem:[#allocation8 + $0xb8] sm:$0xff] %v804
    %840 = vst [vmem:[#allocation8 + $0xc0] sm:$0xff] %v735
    %841 = vst [vmem:[#allocation8 + $0xc8] sm:$0xff] %v737
    %842 = vst [vmem:[#allocation8 + $0xd0] sm:$0xff] %v808
    %843 = vst [vmem:[#allocation8 + $0xd8] sm:$0xff] %v810
    %844 = vst [vmem:[#allocation8 + $0xe0] sm:$0xff] %v739
    %845 = vst [vmem:[#allocation8 + $0xe8] sm:$0xff] %v741
    %846 = vst [vmem:[#allocation8 + $0xf0] sm:$0xff] %v812
    %847 = vst [vmem:[#allocation8 + $0xf8] sm:$0xff] %v814
    // Predicated region
    $region42: #{tpu_custom_call.1} parent=1 // pred_check
      _
    $region43: #{tpu_custom_call.1} parent=1 // pred_check_branch
      %849 = sbr.rel (0) target = $region45
    $region44: #{tpu_custom_call.1} parent=1 // pred_region
      %s851 = ssub.s32 4096, 4096
      %852 = vsyncadd [#allocation5], %s851
      %s853 = sshll.u32 [#allocation8], 4
      %s854 = int_to_ptr.vmem [resolvable:$true] %s853
      %859 = dma.vmem_to_hbm [thread:$0]  %s854, 4096, %s8, [#allocation5], 512, 512, 32
    $region45: #{tpu_custom_call.1} parent=1 // pred_fallthru
      _
    // Predicated region
    $region46: #{tpu_custom_call.1} parent=1 // pred_check
      _
    $region47: #{tpu_custom_call.1} parent=1 // pred_check_branch
      %861 = sbr.rel (0) target = $region49
    $region48: #{tpu_custom_call.1} parent=1 // pred_region
      %862 = dma.done [#allocation5], 4096
    $region49: #{tpu_custom_call.1} parent=1 // pred_fallthru
      _
    %863 = vsyncpa [#allocation4], 1
    %864 = vsyncpa [#allocation7], 1
    %865 = vsyncpa [#allocation5], 1

</llo_original>
